<compile_context>
chip_gen: v7x
topology: tpu7x:2x2x1
jax: 0.10.0
libtpu: 0.0.40
codegen_flags: <defaults>
</compile_context>

<pallas_src>
import functools

import jax
import jax.numpy as jnp
from jax import lax
from jax.experimental import pallas as pl
from jax.experimental.pallas import tpu as pltpu


def _round_up(n, m):
    return (n + m - 1) // m * m


# ----------------------------- fused kernel ---------------------------------
def _tcn_fused_kernel(*refs, layer_meta, K, L, C_stack):
    # refs layout (per grid step = one batch element):
    #   x_ref                              (1, C0, L)
    #   [w_ref_i, ss_ref_i] * n_layers     (C_out, K*C_stack), (2, C_out, 1)
    #   wl_ref                             (3, C_last)   linear weight pre-scaled by 1/L
    #   bl_ref                             (3, 1)
    #   o_ref                              (1, 3, 1)
    #   xs_ref (scratch)                   (K*C_stack, L) stacked shifted taps
    n_layers = len(layer_meta)
    x_ref = refs[0]
    layer_refs = refs[1:1 + 2 * n_layers]
    wl_ref, bl_ref, o_ref, xs_ref = refs[1 + 2 * n_layers:]

    # Zero once so rows unused by layers with C_in < C_stack contribute 0 (not stale VMEM).
    xs_ref[...] = jnp.zeros_like(xs_ref)

    h = x_ref[0]                                           # (C_in, L) f32, lives in VMEM/vregs
    for i, (c_in, c_out, dil) in enumerate(layer_meta):
        w_ref = layer_refs[2 * i]                          # (c_out, K*C_stack)
        ss_ref = layer_refs[2 * i + 1]                     # (2, c_out, 1): [scale, shift]
        pad = (K - 1) * dil // 2
        idx = lax.broadcasted_iota(jnp.int32, (c_in, L), 1)
        # Build stacked shifted input: rows [k*C_stack, k*C_stack+c_in) = x shifted by k*dil-pad.
        for k in range(K):
            off = k * dil - pad
            if off == 0:
                tap = h
            else:
                rolled = pltpu.roll(h, shift=(-off) % L, axis=1)   # XLU lane rotate
                valid = jnp.logical_and(idx + off >= 0, idx + off < L)
                tap = jnp.where(valid, rolled, 0.0)                # zero-pad semantics
            xs_ref[k * C_stack:k * C_stack + c_in, :] = tap
        # Dilated conv over all K taps as ONE MXU matmul; conv bias + BatchNorm folded; ReLU.
        y = jnp.dot(w_ref[...], xs_ref[...], preferred_element_type=jnp.float32)
        y = y * ss_ref[0] + ss_ref[1]
        h = jnp.maximum(y, 0.0)
        # TODO(synk): nn.Dropout is identity here (inference semantics); BatchNorm uses running stats.

    # Head: mean over time folded into wl (pre-scaled by 1/L) -> sum, linear, sigmoid.
    m = jnp.sum(h, axis=-1, keepdims=True)                 # (C_last, 1)
    z = jnp.dot(wl_ref[...], m, preferred_element_type=jnp.float32) + bl_ref[...]
    o_ref[0] = jax.nn.sigmoid(z).astype(o_ref.dtype)


# --------------------------- parameter packing -------------------------------
def pack_params(layer_params, linear_params, *, kernel_size, L, eps=1e-5):
    """One-time layout transforms + BN folding (kept out of the forward path)."""
    K = kernel_size
    c_ins = [int(p['w'].shape[1]) for p in layer_params]
    C_stack = _round_up(max(c_ins), 8)                     # sublane-aligned tap stride
    meta, ws, sss = [], [], []
    for i, p in enumerate(layer_params):
        c_out, c_in, _ = p['w'].shape
        dil = 2 ** i
        assert (K - 1) * dil % 2 == 0, "symmetric 'same' padding requires odd kernel_size"
        wt = jnp.transpose(p['w'], (0, 2, 1))                      # (C_out, K, C_in)
        wt = jnp.pad(wt, ((0, 0), (0, 0), (0, C_stack - c_in)))    # pad C_in -> C_stack (zeros)
        ws.append(wt.reshape(c_out, K * C_stack))
        scale = p['gamma'] / jnp.sqrt(p['var'] + eps)
        shift = (p['b'] - p['mean']) * scale + p['beta']           # conv bias folded into BN shift
        sss.append(jnp.stack([scale, shift]).reshape(2, c_out, 1))
        meta.append((int(c_in), int(c_out), int(dil)))
    w_lin, b_lin = linear_params
    return dict(layer_meta=tuple(meta), K=K, L=int(L), C_stack=int(C_stack),
                w=ws, ss=sss,
                wl=(w_lin / float(L)).astype(jnp.float32),         # mean folded into weight
                bl=b_lin.reshape(3, 1).astype(jnp.float32))


# ------------------------------- forward ------------------------------------
def tcn_forward_fused(x, packed):
    # x: (B, num_poses, num_joints, num_coords)  -- PyTorch input convention
    B, P, J, C0 = x.shape
    L = P * J
    assert L == packed['L'] and C0 == packed['layer_meta'][0][0]
    K, C_stack = packed['K'], packed['C_stack']
    meta = packed['layer_meta']

    h0 = jnp.transpose(x.reshape(B, L, C0), (0, 2, 1))     # (B, C0, L), NCW like Conv1d

    in_specs = [pl.BlockSpec((1, C0, L), lambda b: (b, 0, 0))]
    operands = [h0]
    for (c_in, c_out, dil), w_p, ss in zip(meta, packed['w'], packed['ss']):
        in_specs.append(pl.BlockSpec((c_out, K * C_stack), lambda b: (0, 0)))
        in_specs.append(pl.BlockSpec((2, c_out, 1), lambda b: (0, 0, 0)))
        operands += [w_p, ss]
    c_last = meta[-1][1]
    in_specs.append(pl.BlockSpec((3, c_last), lambda b: (0, 0)))
    in_specs.append(pl.BlockSpec((3, 1), lambda b: (0, 0)))
    operands += [packed['wl'], packed['bl']]

    kernel = functools.partial(_tcn_fused_kernel, layer_meta=meta, K=K, L=L, C_stack=C_stack)
    out = pl.pallas_call(
        kernel,
        out_shape=jax.ShapeDtypeStruct((B, 3, 1), jnp.float32),
        grid_spec=pltpu.PrefetchScalarGridSpec(
            num_scalar_prefetch=0,
            grid=(B,),
            in_specs=in_specs,
            out_specs=pl.BlockSpec((1, 3, 1), lambda b: (b, 0, 0)),
            scratch_shapes=[pltpu.VMEM((K * C_stack, L), jnp.float32)],
        ),
        compiler_params=pltpu.CompilerParams(
            dimension_semantics=("parallel",)),
    )(*operands)
    return out.reshape(B, 3)


# ----------------------------- parameters -----------------------------------
def init_params(key, num_coords, num_channels, kernel_size):
    layer_params = []
    in_c = num_coords
    for out_c in num_channels:
        key, kw, kb, kg, kbe = jax.random.split(key, 5)
        layer_params.append(dict(
            w=0.1 * jax.random.normal(kw, (out_c, in_c, kernel_size), jnp.float32),  # OIW
            b=0.1 * jax.random.normal(kb, (out_c,), jnp.float32),
            gamma=1.0 + 0.1 * jax.random.normal(kg, (out_c,), jnp.float32),
            beta=0.1 * jax.random.normal(kbe, (out_c,), jnp.float32),
            mean=jnp.zeros((out_c,), jnp.float32),
            var=jnp.ones((out_c,), jnp.float32),
        ))
        in_c = out_c
    key, kw, kb = jax.random.split(key, 3)
    w_lin = 0.1 * jax.random.normal(kw, (3, in_c), jnp.float32)
    b_lin = 0.1 * jax.random.normal(kb, (3,), jnp.float32)
    return layer_params, (w_lin, b_lin)


# pure-JAX reference (XLA conv) to validate kernel semantics
def tcn_reference(x, layer_params, linear_params, *, kernel_size, eps=1e-5):
    B, P, J, C0 = x.shape
    h = jnp.transpose(x.reshape(B, P * J, C0), (0, 2, 1))
    for i, p in enumerate(layer_params):
        dil = 2 ** i
        pad = (kernel_size - 1) * dil // 2
        y = lax.conv_general_dilated(h, p['w'], window_strides=(1,),
                                     padding=[(pad, pad)], rhs_dilation=(dil,),
                                     dimension_numbers=('NCH', 'OIH', 'NCH'))
        y = y + p['b'][None, :, None]
        y = (y - p['mean'][None, :, None]) / jnp.sqrt(p['var'][None, :, None] + eps)
        y = y * p['gamma'][None, :, None] + p['beta'][None, :, None]
        h = jnp.maximum(y, 0.0)
    m = h.mean(axis=2)
    w_lin, b_lin = linear_params
    return jax.nn.sigmoid(m @ w_lin.T + b_lin)


if __name__ == "__main__":
    key = jax.random.PRNGKey(0)
    B, P, J, C0 = 2, 16, 8, 4          # batch, num_poses, num_joints, num_coords ; L = 128
    num_channels = [32, 32]
    kernel_size = 3
    dropout = 0.2                      # unused at inference

    kx, kp = jax.random.split(key)
    x = jax.random.normal(kx, (B, P, J, C0), jnp.float32)
    layer_params, linear_params = init_params(kp, C0, num_channels, kernel_size)

    packed = pack_params(layer_params, linear_params, kernel_size=kernel_size, L=P * J)
    out = jax.block_until_ready(tcn_forward_fused(x, packed))

    ref = tcn_reference(x, layer_params, linear_params, kernel_size=kernel_size)
    assert out.shape == (B, 3), out.shape
    assert jnp.allclose(out, ref, atol=1e-4, rtol=1e-4), (out, ref)
    print("KERNEL_OK")
</pallas_src>

<mosaic_0001>
module attributes {stable_mosaic.version = 11 : i64} {
  func.func @_tcn_fused_kernel(%arg0: i32, %arg1: memref<1x4x128xf32, #tpu.memory_space<vmem>>, %arg2: memref<32x96xf32, #tpu.memory_space<vmem>>, %arg3: memref<2x32x1xf32, #tpu.memory_space<vmem>>, %arg4: memref<32x96xf32, #tpu.memory_space<vmem>>, %arg5: memref<2x32x1xf32, #tpu.memory_space<vmem>>, %arg6: memref<3x32xf32, #tpu.memory_space<vmem>>, %arg7: memref<3x1xf32, #tpu.memory_space<vmem>>, %arg8: memref<1x3x1xf32, #tpu.memory_space<vmem>>, %arg9: memref<96x128xf32, #tpu.memory_space<vmem>>) attributes {dimension_semantics = [#tpu.dimension_semantics<parallel>], iteration_bounds = array<i64: 2>, scalar_prefetch = 0 : i64, scratch_operands = 1 : i64, tpu.core_type = #tpu.core_type<tc>, window_params = [{transform_indices = @transform_0, window_bounds = array<i64: 1, 4, 128>}, {pipeline_mode = #tpu.pipeline_mode<synchronous>, transform_indices = @transform_1, window_bounds = array<i64: 32, 96>}, {pipeline_mode = #tpu.pipeline_mode<synchronous>, transform_indices = @transform_2, window_bounds = array<i64: 2, 32, 1>}, {pipeline_mode = #tpu.pipeline_mode<synchronous>, transform_indices = @transform_3, window_bounds = array<i64: 32, 96>}, {pipeline_mode = #tpu.pipeline_mode<synchronous>, transform_indices = @transform_4, window_bounds = array<i64: 2, 32, 1>}, {pipeline_mode = #tpu.pipeline_mode<synchronous>, transform_indices = @transform_5, window_bounds = array<i64: 3, 32>}, {pipeline_mode = #tpu.pipeline_mode<synchronous>, transform_indices = @transform_6, window_bounds = array<i64: 3, 1>}, {transform_indices = @transform_7, window_bounds = array<i64: 1, 3, 1>}]} {
    %cst = arith.constant 0.000000e+00 : f32
    %0 = vector.broadcast %cst : f32 to vector<96x128xf32>
    %c0 = arith.constant 0 : index
    %c0_0 = arith.constant 0 : index
    %1 = vector.load %arg9[%c0, %c0_0] : memref<96x128xf32, #tpu.memory_space<vmem>>, vector<96x128xf32>
    tpu.vector_store %arg9[%c0, %c0_0], %0 {strides = array<i32>} : memref<96x128xf32, #tpu.memory_space<vmem>>, vector<96x128xf32>,
    %c0_1 = arith.constant 0 : index
    %c0_2 = arith.constant 0 : index
    %c0_3 = arith.constant 0 : index
    %2 = vector.load %arg1[%c0_1, %c0_2, %c0_3] : memref<1x4x128xf32, #tpu.memory_space<vmem>>, vector<1x4x128xf32>
    %3 = vector.shape_cast %2 : vector<1x4x128xf32> to vector<4x128xf32>
    %4 = tpu.iota {dimensions = array<i32: 1>} : vector<4x128xi32>
    %c1_i32 = arith.constant 1 : i32
    %5 = tpu.dynamic_rotate %3 by %c1_i32 dim 1 : vector<4x128xf32>, i32 -> vector<4x128xf32>
    %c-1_i32 = arith.constant -1 : i32
    %6 = vector.broadcast %c-1_i32 : i32 to vector<4x128xi32>
    %7 = arith.addi %4, %6 : vector<4x128xi32>
    %c0_i32 = arith.constant 0 : i32
    %8 = vector.broadcast %c0_i32 : i32 to vector<4x128xi32>
    %9 = arith.cmpi sge, %7, %8 : vector<4x128xi32>
    %c-1_i32_4 = arith.constant -1 : i32
    %10 = vector.broadcast %c-1_i32_4 : i32 to vector<4x128xi32>
    %11 = arith.addi %4, %10 : vector<4x128xi32>
    %c128_i32 = arith.constant 128 : i32
    %12 = vector.broadcast %c128_i32 : i32 to vector<4x128xi32>
    %13 = arith.cmpi slt, %11, %12 : vector<4x128xi32>
    %14 = arith.andi %9, %13 : vector<4x128xi1>
    %cst_5 = arith.constant 0.000000e+00 : f32
    %15 = vector.broadcast %cst_5 : f32 to vector<4x128xf32>
    %16 = arith.select %14, %5, %15 : vector<4x128xi1>, vector<4x128xf32>
    %c0_6 = arith.constant 0 : index
    %c0_7 = arith.constant 0 : index
    %17 = vector.load %arg9[%c0_6, %c0_7] : memref<96x128xf32, #tpu.memory_space<vmem>>, vector<4x128xf32>
    tpu.vector_store %arg9[%c0_6, %c0_7], %16 {strides = array<i32>} : memref<96x128xf32, #tpu.memory_space<vmem>>, vector<4x128xf32>,
    %c32 = arith.constant 32 : index
    %c0_8 = arith.constant 0 : index
    %18 = vector.load %arg9[%c32, %c0_8] : memref<96x128xf32, #tpu.memory_space<vmem>>, vector<4x128xf32>
    tpu.vector_store %arg9[%c32, %c0_8], %3 {strides = array<i32>} : memref<96x128xf32, #tpu.memory_space<vmem>>, vector<4x128xf32>,
    %c127_i32 = arith.constant 127 : i32
    %19 = tpu.dynamic_rotate %3 by %c127_i32 dim 1 : vector<4x128xf32>, i32 -> vector<4x128xf32>
    %c1_i32_9 = arith.constant 1 : i32
    %20 = vector.broadcast %c1_i32_9 : i32 to vector<4x128xi32>
    %21 = arith.addi %4, %20 : vector<4x128xi32>
    %c0_i32_10 = arith.constant 0 : i32
    %22 = vector.broadcast %c0_i32_10 : i32 to vector<4x128xi32>
    %23 = arith.cmpi sge, %21, %22 : vector<4x128xi32>
    %c1_i32_11 = arith.constant 1 : i32
    %24 = vector.broadcast %c1_i32_11 : i32 to vector<4x128xi32>
    %25 = arith.addi %4, %24 : vector<4x128xi32>
    %c128_i32_12 = arith.constant 128 : i32
    %26 = vector.broadcast %c128_i32_12 : i32 to vector<4x128xi32>
    %27 = arith.cmpi slt, %25, %26 : vector<4x128xi32>
    %28 = arith.andi %23, %27 : vector<4x128xi1>
    %cst_13 = arith.constant 0.000000e+00 : f32
    %29 = vector.broadcast %cst_13 : f32 to vector<4x128xf32>
    %30 = arith.select %28, %19, %29 : vector<4x128xi1>, vector<4x128xf32>
    %c64 = arith.constant 64 : index
    %c0_14 = arith.constant 0 : index
    %31 = vector.load %arg9[%c64, %c0_14] : memref<96x128xf32, #tpu.memory_space<vmem>>, vector<4x128xf32>
    tpu.vector_store %arg9[%c64, %c0_14], %30 {strides = array<i32>} : memref<96x128xf32, #tpu.memory_space<vmem>>, vector<4x128xf32>,
    %c0_15 = arith.constant 0 : index
    %c0_16 = arith.constant 0 : index
    %32 = vector.load %arg2[%c0_15, %c0_16] : memref<32x96xf32, #tpu.memory_space<vmem>>, vector<32x96xf32>
    %c0_17 = arith.constant 0 : index
    %c0_18 = arith.constant 0 : index
    %33 = vector.load %arg9[%c0_17, %c0_18] : memref<96x128xf32, #tpu.memory_space<vmem>>, vector<96x128xf32>
    %cst_19 = arith.constant dense<0.000000e+00> : vector<32x128xf32>
    %34 = tpu.matmul %32, %33, %cst_19 {dimension_numbers = #tpu.dot_dimension_numbers<[1], [0], [0], [1], [0, 0, 1, 1], [], []>} : vector<32x96xf32>, vector<96x128xf32>, vector<32x128xf32> -> vector<32x128xf32>
    %c0_20 = arith.constant 0 : index
    %c0_21 = arith.constant 0 : index
    %c0_22 = arith.constant 0 : index
    %35 = vector.load %arg3[%c0_20, %c0_21, %c0_22] : memref<2x32x1xf32, #tpu.memory_space<vmem>>, vector<1x32x1xf32>
    %36 = vector.shape_cast %35 : vector<1x32x1xf32> to vector<32x1xf32>
    %37 = vector.broadcast %36 : vector<32x1xf32> to vector<32x128xf32>
    %38 = arith.mulf %34, %37 : vector<32x128xf32>
    %c1 = arith.constant 1 : index
    %c0_23 = arith.constant 0 : index
    %c0_24 = arith.constant 0 : index
    %39 = vector.load %arg3[%c1, %c0_23, %c0_24] : memref<2x32x1xf32, #tpu.memory_space<vmem>>, vector<1x32x1xf32>
    %40 = vector.shape_cast %39 : vector<1x32x1xf32> to vector<32x1xf32>
    %41 = vector.broadcast %40 : vector<32x1xf32> to vector<32x128xf32>
    %42 = arith.addf %38, %41 : vector<32x128xf32>
    %cst_25 = arith.constant 0.000000e+00 : f32
    %43 = vector.broadcast %cst_25 : f32 to vector<32x128xf32>
    %44 = arith.maximumf %42, %43 : vector<32x128xf32>
    %45 = tpu.iota {dimensions = array<i32: 1>} : vector<32x128xi32>
    %c2_i32 = arith.constant 2 : i32
    %46 = tpu.dynamic_rotate %44 by %c2_i32 dim 1 : vector<32x128xf32>, i32 -> vector<32x128xf32>
    %c-2_i32 = arith.constant -2 : i32
    %47 = vector.broadcast %c-2_i32 : i32 to vector<32x128xi32>
    %48 = arith.addi %45, %47 : vector<32x128xi32>
    %c0_i32_26 = arith.constant 0 : i32
    %49 = vector.broadcast %c0_i32_26 : i32 to vector<32x128xi32>
    %50 = arith.cmpi sge, %48, %49 : vector<32x128xi32>
    %c-2_i32_27 = arith.constant -2 : i32
    %51 = vector.broadcast %c-2_i32_27 : i32 to vector<32x128xi32>
    %52 = arith.addi %45, %51 : vector<32x128xi32>
    %c128_i32_28 = arith.constant 128 : i32
    %53 = vector.broadcast %c128_i32_28 : i32 to vector<32x128xi32>
    %54 = arith.cmpi slt, %52, %53 : vector<32x128xi32>
    %55 = arith.andi %50, %54 : vector<32x128xi1>
    %cst_29 = arith.constant 0.000000e+00 : f32
    %56 = vector.broadcast %cst_29 : f32 to vector<32x128xf32>
    %57 = arith.select %55, %46, %56 : vector<32x128xi1>, vector<32x128xf32>
    %c0_30 = arith.constant 0 : index
    %c0_31 = arith.constant 0 : index
    %58 = vector.load %arg9[%c0_30, %c0_31] : memref<96x128xf32, #tpu.memory_space<vmem>>, vector<32x128xf32>
    tpu.vector_store %arg9[%c0_30, %c0_31], %57 {strides = array<i32>} : memref<96x128xf32, #tpu.memory_space<vmem>>, vector<32x128xf32>,
    %c32_32 = arith.constant 32 : index
    %c0_33 = arith.constant 0 : index
    %59 = vector.load %arg9[%c32_32, %c0_33] : memref<96x128xf32, #tpu.memory_space<vmem>>, vector<32x128xf32>
    tpu.vector_store %arg9[%c32_32, %c0_33], %44 {strides = array<i32>} : memref<96x128xf32, #tpu.memory_space<vmem>>, vector<32x128xf32>,
    %c126_i32 = arith.constant 126 : i32
    %60 = tpu.dynamic_rotate %44 by %c126_i32 dim 1 : vector<32x128xf32>, i32 -> vector<32x128xf32>
    %c2_i32_34 = arith.constant 2 : i32
    %61 = vector.broadcast %c2_i32_34 : i32 to vector<32x128xi32>
    %62 = arith.addi %45, %61 : vector<32x128xi32>
    %c0_i32_35 = arith.constant 0 : i32
    %63 = vector.broadcast %c0_i32_35 : i32 to vector<32x128xi32>
    %64 = arith.cmpi sge, %62, %63 : vector<32x128xi32>
    %c2_i32_36 = arith.constant 2 : i32
    %65 = vector.broadcast %c2_i32_36 : i32 to vector<32x128xi32>
    %66 = arith.addi %45, %65 : vector<32x128xi32>
    %c128_i32_37 = arith.constant 128 : i32
    %67 = vector.broadcast %c128_i32_37 : i32 to vector<32x128xi32>
    %68 = arith.cmpi slt, %66, %67 : vector<32x128xi32>
    %69 = arith.andi %64, %68 : vector<32x128xi1>
    %cst_38 = arith.constant 0.000000e+00 : f32
    %70 = vector.broadcast %cst_38 : f32 to vector<32x128xf32>
    %71 = arith.select %69, %60, %70 : vector<32x128xi1>, vector<32x128xf32>
    %c64_39 = arith.constant 64 : index
    %c0_40 = arith.constant 0 : index
    %72 = vector.load %arg9[%c64_39, %c0_40] : memref<96x128xf32, #tpu.memory_space<vmem>>, vector<32x128xf32>
    tpu.vector_store %arg9[%c64_39, %c0_40], %71 {strides = array<i32>} : memref<96x128xf32, #tpu.memory_space<vmem>>, vector<32x128xf32>,
    %c0_41 = arith.constant 0 : index
    %c0_42 = arith.constant 0 : index
    %73 = vector.load %arg4[%c0_41, %c0_42] : memref<32x96xf32, #tpu.memory_space<vmem>>, vector<32x96xf32>
    %c0_43 = arith.constant 0 : index
    %c0_44 = arith.constant 0 : index
    %74 = vector.load %arg9[%c0_43, %c0_44] : memref<96x128xf32, #tpu.memory_space<vmem>>, vector<96x128xf32>
    %cst_45 = arith.constant dense<0.000000e+00> : vector<32x128xf32>
    %75 = tpu.matmul %73, %74, %cst_45 {dimension_numbers = #tpu.dot_dimension_numbers<[1], [0], [0], [1], [0, 0, 1, 1], [], []>} : vector<32x96xf32>, vector<96x128xf32>, vector<32x128xf32> -> vector<32x128xf32>
    %c0_46 = arith.constant 0 : index
    %c0_47 = arith.constant 0 : index
    %c0_48 = arith.constant 0 : index
    %76 = vector.load %arg5[%c0_46, %c0_47, %c0_48] : memref<2x32x1xf32, #tpu.memory_space<vmem>>, vector<1x32x1xf32>
    %77 = vector.shape_cast %76 : vector<1x32x1xf32> to vector<32x1xf32>
    %78 = vector.broadcast %77 : vector<32x1xf32> to vector<32x128xf32>
    %79 = arith.mulf %75, %78 : vector<32x128xf32>
    %c1_49 = arith.constant 1 : index
    %c0_50 = arith.constant 0 : index
    %c0_51 = arith.constant 0 : index
    %80 = vector.load %arg5[%c1_49, %c0_50, %c0_51] : memref<2x32x1xf32, #tpu.memory_space<vmem>>, vector<1x32x1xf32>
    %81 = vector.shape_cast %80 : vector<1x32x1xf32> to vector<32x1xf32>
    %82 = vector.broadcast %81 : vector<32x1xf32> to vector<32x128xf32>
    %83 = arith.addf %79, %82 : vector<32x128xf32>
    %cst_52 = arith.constant 0.000000e+00 : f32
    %84 = vector.broadcast %cst_52 : f32 to vector<32x128xf32>
    %85 = arith.maximumf %83, %84 : vector<32x128xf32>
    %cst_53 = arith.constant dense<0.000000e+00> : vector<32xf32>
    %86 = vector.multi_reduction <add>, %85, %cst_53 [1] : vector<32x128xf32> to vector<32xf32>
    %87 = vector.shape_cast %86 : vector<32xf32> to vector<32x1xf32>
    %c0_54 = arith.constant 0 : index
    %c0_55 = arith.constant 0 : index
    %88 = vector.load %arg6[%c0_54, %c0_55] : memref<3x32xf32, #tpu.memory_space<vmem>>, vector<3x32xf32>
    %cst_56 = arith.constant dense<0.000000e+00> : vector<3x1xf32>
    %89 = tpu.matmul %88, %87, %cst_56 {dimension_numbers = #tpu.dot_dimension_numbers<[1], [0], [0], [1], [0, 0, 1, 1], [], []>} : vector<3x32xf32>, vector<32x1xf32>, vector<3x1xf32> -> vector<3x1xf32>
    %c0_57 = arith.constant 0 : index
    %c0_58 = arith.constant 0 : index
    %90 = vector.load %arg7[%c0_57, %c0_58] : memref<3x1xf32, #tpu.memory_space<vmem>>, vector<3x1xf32>
    %91 = arith.addf %89, %90 : vector<3x1xf32>
    %92 = arith.negf %91 : vector<3x1xf32>
    %93 = math.exp %92 : vector<3x1xf32>
    %cst_59 = arith.constant 1.000000e+00 : f32
    %94 = vector.broadcast %cst_59 : f32 to vector<3x1xf32>
    %95 = arith.addf %94, %93 : vector<3x1xf32>
    %96 = arith.divf %94, %95 : vector<3x1xf32>
    %c0_60 = arith.constant 0 : index
    %c0_61 = arith.constant 0 : index
    %c0_62 = arith.constant 0 : index
    %97 = vector.load %arg8[%c0_60, %c0_61, %c0_62] : memref<1x3x1xf32, #tpu.memory_space<vmem>>, vector<1x3x1xf32>
    %98 = vector.shape_cast %97 : vector<1x3x1xf32> to vector<3x1xf32>
    %99 = vector.shape_cast %96 : vector<3x1xf32> to vector<1x3x1xf32>
    tpu.vector_store %arg8[%c0_60, %c0_61, %c0_62], %99 {strides = array<i32>} : memref<1x3x1xf32, #tpu.memory_space<vmem>>, vector<1x3x1xf32>,
    return
  }
  func.func @transform_0(%arg0: i32) -> (i32, i32, i32) {
    %c0_i32 = arith.constant 0 : i32
    %c0_i32_0 = arith.constant 0 : i32
    %c0_i32_1 = arith.constant 0 : i32
    return %arg0, %c0_i32, %c0_i32_0 : i32, i32, i32
  }
  func.func @transform_1(%arg0: i32) -> (i32, i32) {
    %c0_i32 = arith.constant 0 : i32
    %c0_i32_0 = arith.constant 0 : i32
    %c0_i32_1 = arith.constant 0 : i32
    return %c0_i32, %c0_i32_0 : i32, i32
  }
  func.func @transform_2(%arg0: i32) -> (i32, i32, i32) {
    %c0_i32 = arith.constant 0 : i32
    %c0_i32_0 = arith.constant 0 : i32
    %c0_i32_1 = arith.constant 0 : i32
    %c0_i32_2 = arith.constant 0 : i32
    return %c0_i32, %c0_i32_0, %c0_i32_1 : i32, i32, i32
  }
  func.func @transform_3(%arg0: i32) -> (i32, i32) {
    %c0_i32 = arith.constant 0 : i32
    %c0_i32_0 = arith.constant 0 : i32
    %c0_i32_1 = arith.constant 0 : i32
    return %c0_i32, %c0_i32_0 : i32, i32
  }
  func.func @transform_4(%arg0: i32) -> (i32, i32, i32) {
    %c0_i32 = arith.constant 0 : i32
    %c0_i32_0 = arith.constant 0 : i32
    %c0_i32_1 = arith.constant 0 : i32
    %c0_i32_2 = arith.constant 0 : i32
    return %c0_i32, %c0_i32_0, %c0_i32_1 : i32, i32, i32
  }
  func.func @transform_5(%arg0: i32) -> (i32, i32) {
    %c0_i32 = arith.constant 0 : i32
    %c0_i32_0 = arith.constant 0 : i32
    %c0_i32_1 = arith.constant 0 : i32
    return %c0_i32, %c0_i32_0 : i32, i32
  }
  func.func @transform_6(%arg0: i32) -> (i32, i32) {
    %c0_i32 = arith.constant 0 : i32
    %c0_i32_0 = arith.constant 0 : i32
    %c0_i32_1 = arith.constant 0 : i32
    return %c0_i32, %c0_i32_0 : i32, i32
  }
  func.func @transform_7(%arg0: i32) -> (i32, i32, i32) {
    %c0_i32 = arith.constant 0 : i32
    %c0_i32_0 = arith.constant 0 : i32
    %c0_i32_1 = arith.constant 0 : i32
    return %arg0, %c0_i32, %c0_i32_0 : i32, i32, i32
  }
}

</mosaic_0001>

<llo_original>
// kernel: tpu_custom_call.1
$region0: #{tpu_custom_call.1}
  #allocation0 [shape = 'u32[]', space=smem, size = 0x4, offset = 0x4, fixed_abs, tag = 'smem constant byte address 0x4 - core index']
  #allocation1 [shape = 'u32[144,128]{1,0:T(1,128)}', space=vmem, size = 0x12000, scoped, tag = 'internal scratch']
  #allocation2 [shape = 'f32[96,128]{1,0:T(8,128)}', space=vmem, size = 0xc000, scoped, tag = 'scratch operand']
  %s0 = inlined_call_operand.vmem [shape: f32[2,4,128], index: 0, kind: input, shape index: {}]
  %s1 = inlined_call_operand.vmem [shape: f32[32,96], index: 1, kind: input, shape index: {}]
  %s2 = inlined_call_operand.vmem [shape: f32[2,32,1], index: 2, kind: input, shape index: {}]
  %s3 = inlined_call_operand.vmem [shape: f32[32,96], index: 3, kind: input, shape index: {}]
  %s4 = inlined_call_operand.vmem [shape: f32[2,32,1], index: 4, kind: input, shape index: {}]
  %s5 = inlined_call_operand.vmem [shape: f32[3,32], index: 5, kind: input, shape index: {}]
  %s6 = inlined_call_operand.vmem [shape: f32[3,1], index: 6, kind: input, shape index: {}]
  %s7 = inlined_call_operand.vmem [shape: f32[2,3,1], index: 7, kind: output, shape index: {}]
  %s8 = sld [smem:[#allocation0]]
  $region61: #{tpu_custom_call.1} parent=0
    _
  %s10 = ssub.s32 1, %s8
  %s11 = scalar_select 0, %s10, %s8
  loop: start=0, step=1, limit=4
  $region2: #{tpu_custom_call.1} parent=0 // loop_pre_header
    _
  $region3: #{tpu_custom_call.1} parent=0 // loop_header
    %s13 = sphi 0, %s17
    %p14 = scmp.ge.s32.totalorder %s13, 4
    %s23 = sphi 0, %s25
    %s26 = sphi 0, %s23
    %s27 = sphi 0, %s26
    %s43 = sphi 0, %s27
    %s47 = sphi 0, %s47
    %s49 = sphi 0, %s47
    %s50 = sphi 0, %s49
    %s64 = sphi 0, %s50
    %s68 = sphi 0, %s68
    %s70 = sphi 0, %s68
    %s71 = sphi 0, %s70
    %s85 = sphi 0, %s71
    %s89 = sphi 0, %s89
    %s91 = sphi 0, %s89
    %s92 = sphi 0, %s91
    %s106 = sphi 0, %s92
    %s110 = sphi 0, %s110
    %s112 = sphi 0, %s110
    %s113 = sphi 0, %s112
    %s127 = sphi 0, %s113
    %s131 = sphi 0, %s131
    %s133 = sphi 0, %s131
    %s134 = sphi 0, %s133
    %s148 = sphi 0, %s134
    %s152 = sphi 0, %s152
    %s154 = sphi 0, %s152
    %s155 = sphi 0, %s154
    %s169 = sphi 0, %s155
    %s175 = sphi 0, %s177
    %s178 = sphi 0, %s175
    %s179 = sphi 0, %s178
    %s195 = sphi 0, %s179
  $region4: #{tpu_custom_call.1} parent=0 // loop_header_branch
    %16 = sbr.rel (%p14) target = $region8
  $region5: #{tpu_custom_call.1} parent=0 // loop_body
    %s18 = ssub.s32 %s13, 1
    %s19 = ssub.s32 %s13, 2
    %s20 = sadd.s32 %s13, 1
    %s21 = ssub.s32 %s13, %s20
    %p22 = scmp.eq.s32.totalorder %s21, 0
    %s24 = sadd.s32 %s23, 1
    %s25 = scalar_select %p22, %s23, %s24
    %p28 = pneg %p22
    %p29 = scmp.eq.s32.totalorder %s13, 1
    %p30 = por %p28, %p29
    %p31 = scmp.ne.s32.totalorder %s23, %s26
    %p32 = scmp.eq.s32.totalorder %s13, 0
    %p33 = por %p31, %p32
    %p34 = scmp.ne.s32.totalorder %s23, %s26
    %p35 = scmp.eq.s32.totalorder %s18, 1
    %p36 = por %p34, %p35
    %p37 = scmp.ne.s32.totalorder %s26, %s27
    %p38 = scmp.eq.s32.totalorder %s18, 0
    %p39 = por %p37, %p38
    %p40 = scmp.ne.s32.totalorder %s26, %s27
    %p41 = scmp.eq.s32.totalorder %s19, 1
    %p42 = por %p40, %p41
    %p44 = scmp.ne.s32.totalorder %s27, %s43
    %p45 = scmp.eq.s32.totalorder %s19, 0
    %p46 = por %p44, %p45
    %s48 = sadd.s32 %s47, 1
    %p51 = scmp.eq.s32.totalorder %s13, 1
    %p52 = scmp.ne.s32.totalorder %s47, %s49
    %p53 = scmp.eq.s32.totalorder %s13, 0
    %p54 = por %p52, %p53
    %p55 = scmp.ne.s32.totalorder %s47, %s49
    %p56 = scmp.eq.s32.totalorder %s18, 1
    %p57 = por %p55, %p56
    %p58 = scmp.ne.s32.totalorder %s49, %s50
    %p59 = scmp.eq.s32.totalorder %s18, 0
    %p60 = por %p58, %p59
    %p61 = scmp.ne.s32.totalorder %s49, %s50
    %p62 = scmp.eq.s32.totalorder %s19, 1
    %p63 = por %p61, %p62
    %p65 = scmp.ne.s32.totalorder %s50, %s64
    %p66 = scmp.eq.s32.totalorder %s19, 0
    %p67 = por %p65, %p66
    %s69 = sadd.s32 %s68, 1
    %p72 = scmp.eq.s32.totalorder %s13, 1
    %p73 = scmp.ne.s32.totalorder %s68, %s70
    %p74 = scmp.eq.s32.totalorder %s13, 0
    %p75 = por %p73, %p74
    %p76 = scmp.ne.s32.totalorder %s68, %s70
    %p77 = scmp.eq.s32.totalorder %s18, 1
    %p78 = por %p76, %p77
    %p79 = scmp.ne.s32.totalorder %s70, %s71
    %p80 = scmp.eq.s32.totalorder %s18, 0
    %p81 = por %p79, %p80
    %p82 = scmp.ne.s32.totalorder %s70, %s71
    %p83 = scmp.eq.s32.totalorder %s19, 1
    %p84 = por %p82, %p83
    %p86 = scmp.ne.s32.totalorder %s71, %s85
    %p87 = scmp.eq.s32.totalorder %s19, 0
    %p88 = por %p86, %p87
    %s90 = sadd.s32 %s89, 1
    %p93 = scmp.eq.s32.totalorder %s13, 1
    %p94 = scmp.ne.s32.totalorder %s89, %s91
    %p95 = scmp.eq.s32.totalorder %s13, 0
    %p96 = por %p94, %p95
    %p97 = scmp.ne.s32.totalorder %s89, %s91
    %p98 = scmp.eq.s32.totalorder %s18, 1
    %p99 = por %p97, %p98
    %p100 = scmp.ne.s32.totalorder %s91, %s92
    %p101 = scmp.eq.s32.totalorder %s18, 0
    %p102 = por %p100, %p101
    %p103 = scmp.ne.s32.totalorder %s91, %s92
    %p104 = scmp.eq.s32.totalorder %s19, 1
    %p105 = por %p103, %p104
    %p107 = scmp.ne.s32.totalorder %s92, %s106
    %p108 = scmp.eq.s32.totalorder %s19, 0
    %p109 = por %p107, %p108
    %s111 = sadd.s32 %s110, 1
    %p114 = scmp.eq.s32.totalorder %s13, 1
    %p115 = scmp.ne.s32.totalorder %s110, %s112
    %p116 = scmp.eq.s32.totalorder %s13, 0
    %p117 = por %p115, %p116
    %p118 = scmp.ne.s32.totalorder %s110, %s112
    %p119 = scmp.eq.s32.totalorder %s18, 1
    %p120 = por %p118, %p119
    %p121 = scmp.ne.s32.totalorder %s112, %s113
    %p122 = scmp.eq.s32.totalorder %s18, 0
    %p123 = por %p121, %p122
    %p124 = scmp.ne.s32.totalorder %s112, %s113
    %p125 = scmp.eq.s32.totalorder %s19, 1
    %p126 = por %p124, %p125
    %p128 = scmp.ne.s32.totalorder %s113, %s127
    %p129 = scmp.eq.s32.totalorder %s19, 0
    %p130 = por %p128, %p129
    %s132 = sadd.s32 %s131, 1
    %p135 = scmp.eq.s32.totalorder %s13, 1
    %p136 = scmp.ne.s32.totalorder %s131, %s133
    %p137 = scmp.eq.s32.totalorder %s13, 0
    %p138 = por %p136, %p137
    %p139 = scmp.ne.s32.totalorder %s131, %s133
    %p140 = scmp.eq.s32.totalorder %s18, 1
    %p141 = por %p139, %p140
    %p142 = scmp.ne.s32.totalorder %s133, %s134
    %p143 = scmp.eq.s32.totalorder %s18, 0
    %p144 = por %p142, %p143
    %p145 = scmp.ne.s32.totalorder %s133, %s134
    %p146 = scmp.eq.s32.totalorder %s19, 1
    %p147 = por %p145, %p146
    %p149 = scmp.ne.s32.totalorder %s134, %s148
    %p150 = scmp.eq.s32.totalorder %s19, 0
    %p151 = por %p149, %p150
    %s153 = sadd.s32 %s152, 1
    %p156 = scmp.eq.s32.totalorder %s13, 1
    %p157 = scmp.ne.s32.totalorder %s152, %s154
    %p158 = scmp.eq.s32.totalorder %s13, 0
    %p159 = por %p157, %p158
    %p160 = scmp.ne.s32.totalorder %s152, %s154
    %p161 = scmp.eq.s32.totalorder %s18, 1
    %p162 = por %p160, %p161
    %p163 = scmp.ne.s32.totalorder %s154, %s155
    %p164 = scmp.eq.s32.totalorder %s18, 0
    %p165 = por %p163, %p164
    %p166 = scmp.ne.s32.totalorder %s154, %s155
    %p167 = scmp.eq.s32.totalorder %s19, 1
    %p168 = por %p166, %p167
    %p170 = scmp.ne.s32.totalorder %s155, %s169
    %p171 = scmp.eq.s32.totalorder %s19, 0
    %p172 = por %p170, %p171
    %s173 = ssub.s32 %s13, %s20
    %p174 = scmp.eq.s32.totalorder %s173, 0
    %s176 = sadd.s32 %s175, 1
    %s177 = scalar_select %p174, %s175, %s176
    %p180 = pneg %p174
    %p181 = scmp.eq.s32.totalorder %s13, 1
    %p182 = por %p180, %p181
    %p183 = scmp.ne.s32.totalorder %s175, %s178
    %p184 = scmp.eq.s32.totalorder %s13, 0
    %p185 = por %p183, %p184
    %p186 = scmp.ne.s32.totalorder %s175, %s178
    %p187 = scmp.eq.s32.totalorder %s18, 1
    %p188 = por %p186, %p187
    %p189 = scmp.ne.s32.totalorder %s178, %s179
    %p190 = scmp.eq.s32.totalorder %s18, 0
    %p191 = por %p189, %p190
    %p192 = scmp.ne.s32.totalorder %s178, %s179
    %p193 = scmp.eq.s32.totalorder %s19, 1
    %p194 = por %p192, %p193
    %p196 = scmp.ne.s32.totalorder %s179, %s195
    %p197 = scmp.eq.s32.totalorder %s19, 0
    %p198 = por %p196, %p197
    %p199 = scmp.le.s32.totalorder 1, %s13
    %p200 = scmp.lt.s32.totalorder %s13, 3
    %p201 = pnand %p199, %p200
    %p202 = pneg %p201
    // Predicated region
    $region9: #{tpu_custom_call.1} parent=5 // pred_check
      _
    $region10: #{tpu_custom_call.1} parent=5 // pred_check_branch
      %204 = sbr.rel (%p201) target = $region12
    $region11: #{tpu_custom_call.1} parent=5 // pred_region
      %s205 = ssub.s32 %s13, 1
      // Predicated region
      $region13: #{tpu_custom_call.1} parent=11 // pred_check
        %p206 = pneg %p60
      $region14: #{tpu_custom_call.1} parent=11 // pred_check_branch
        %208 = sbr.rel (%p206) target = $region16
      $region15: #{tpu_custom_call.1} parent=11 // pred_region
        _
      $region16: #{tpu_custom_call.1} parent=11 // pred_fallthru
        _
      // Predicated region
      $region17: #{tpu_custom_call.1} parent=11 // pred_check
        %p209 = pneg %p81
      $region18: #{tpu_custom_call.1} parent=11 // pred_check_branch
        %211 = sbr.rel (%p209) target = $region20
      $region19: #{tpu_custom_call.1} parent=11 // pred_region
        _
      $region20: #{tpu_custom_call.1} parent=11 // pred_fallthru
        _
      // Predicated region
      $region21: #{tpu_custom_call.1} parent=11 // pred_check
        %p212 = pneg %p102
      $region22: #{tpu_custom_call.1} parent=11 // pred_check_branch
        %214 = sbr.rel (%p212) target = $region24
      $region23: #{tpu_custom_call.1} parent=11 // pred_region
        _
      $region24: #{tpu_custom_call.1} parent=11 // pred_fallthru
        _
      // Predicated region
      $region25: #{tpu_custom_call.1} parent=11 // pred_check
        %p215 = pneg %p123
      $region26: #{tpu_custom_call.1} parent=11 // pred_check_branch
        %217 = sbr.rel (%p215) target = $region28
      $region27: #{tpu_custom_call.1} parent=11 // pred_region
        _
      $region28: #{tpu_custom_call.1} parent=11 // pred_fallthru
        _
      // Predicated region
      $region29: #{tpu_custom_call.1} parent=11 // pred_check
        %p218 = pneg %p144
      $region30: #{tpu_custom_call.1} parent=11 // pred_check_branch
        %220 = sbr.rel (%p218) target = $region32
      $region31: #{tpu_custom_call.1} parent=11 // pred_region
        _
      $region32: #{tpu_custom_call.1} parent=11 // pred_fallthru
        _
      // Predicated region
      $region33: #{tpu_custom_call.1} parent=11 // pred_check
        %p221 = pneg %p165
      $region34: #{tpu_custom_call.1} parent=11 // pred_check_branch
        %223 = sbr.rel (%p221) target = $region36
      $region35: #{tpu_custom_call.1} parent=11 // pred_region
        _
      $region36: #{tpu_custom_call.1} parent=11 // pred_fallthru
        _
    $region12: #{tpu_custom_call.1} parent=5 // pred_fallthru
      _
    %p224 = scmp.lt.s32.totalorder %s13, 2
    // Predicated region
    $region37: #{tpu_custom_call.1} parent=5 // pred_check
      %p225 = pneg %p224
    $region38: #{tpu_custom_call.1} parent=5 // pred_check_branch
      %227 = sbr.rel (%p225) target = $region40
    $region39: #{tpu_custom_call.1} parent=5 // pred_region
      // Predicated region
      $region41: #{tpu_custom_call.1} parent=39 // pred_check
        %p228 = pneg %p33
      $region42: #{tpu_custom_call.1} parent=39 // pred_check_branch
        %230 = sbr.rel (%p228) target = $region44
      $region43: #{tpu_custom_call.1} parent=39 // pred_region
        %p231 = scmp.lt.s32.totalorder %s13, 1
        %s232 = scalar_select %p231, %s13, 1
        %s233 = smul.addr %s232, 4
        %s234 = scalar_lea.vmem %s0, %s233
      $region44: #{tpu_custom_call.1} parent=39 // pred_fallthru
        _
    $region40: #{tpu_custom_call.1} parent=5 // pred_fallthru
      _
    %p235 = scmp.le.s32.totalorder 1, %s13
    %p236 = scmp.lt.s32.totalorder %s13, 3
    %p237 = pnand %p235, %p236
    %p238 = pneg %p237
    // Predicated region
    $region45: #{tpu_custom_call.1} parent=5 // pred_check
      _
    $region46: #{tpu_custom_call.1} parent=5 // pred_check_branch
      %240 = sbr.rel (%p237) target = $region48
    $region47: #{tpu_custom_call.1} parent=5 // pred_region
      %s241 = ssub.s32 %s13, 1
      %p242 = scmp.lt.s32.totalorder %s18, 1
      %s243 = scalar_select %p242, %s18, 1
      %s244 = smul.addr %s243, 4
      %s245 = scalar_lea.vmem %s0, %s244
      %p246 = pneg %p39
      %p247 = pneg %p36
      %p248 = pneg %p60
      %p249 = pneg %p57
      %p250 = pneg %p81
      %p251 = pneg %p78
      %p252 = pneg %p102
      %p253 = pneg %p99
      %p254 = pneg %p123
      %p255 = pneg %p120
      %p256 = pneg %p144
      %p257 = pneg %p141
      %p258 = pneg %p165
      %p259 = pneg %p162
      %p260 = pneg %p191
      %p261 = pneg %p188
      %p262 = scmp.lt.s32.totalorder %s18, 1
      %s263 = scalar_select %p262, %s18, 1
      %s264 = smul.addr %s263, 4
      %s265 = scalar_lea.vmem %s7, %s264
      %p266 = scmp.lt.s32.totalorder %s18, 1
      %s267 = scalar_select %p266, %s18, 1
      %s268 = smul.addr %s267, 4
      %s269 = scalar_lea.vmem %s0, %s268
      %p270 = scmp.lt.s32.totalorder %s18, 1
      %s271 = scalar_select %p270, %s18, 1
      %s272 = smul.addr %s271, 4
      %s273 = scalar_lea.vmem %s7, %s272
      %274 = vst [vmem:[#allocation2] sm:$0xff] 0.0
      %275 = vst [vmem:[#allocation2 + $0x8] sm:$0xff] 0.0
      %276 = vst [vmem:[#allocation2 + $0x10] sm:$0xff] 0.0
      %277 = vst [vmem:[#allocation2 + $0x18] sm:$0xff] 0.0
      %278 = vst [vmem:[#allocation2 + $0x20] sm:$0xff] 0.0
      %279 = vst [vmem:[#allocation2 + $0x28] sm:$0xff] 0.0
      %280 = vst [vmem:[#allocation2 + $0x30] sm:$0xff] 0.0
      %281 = vst [vmem:[#allocation2 + $0x38] sm:$0xff] 0.0
      %282 = vst [vmem:[#allocation2 + $0x40] sm:$0xff] 0.0
      %283 = vst [vmem:[#allocation2 + $0x48] sm:$0xff] 0.0
      %284 = vst [vmem:[#allocation2 + $0x50] sm:$0xff] 0.0
      %285 = vst [vmem:[#allocation2 + $0x58] sm:$0xff] 0.0
      %v286 = vld [vmem:[%s269] sm:$0xf]
      %v287 = vlaneseq
      %v288 = vand.u32 %v287, 127
      %289 = vrot.lane.b32.xlu0 %v286, 1
      %v290 = vpop.permute.xlu0 %289
      %v291 = vadd.s32 %v288, 4294967295
      %vm292 = vcmp.ge.s32.totalorder %v291, 0
      %vm293 = vcmp.lt.s32.totalorder %v291, 128
      %vm294 = vmand %vm292, %vm293
      %v295 = vsel %vm294, %v290, 0.0
      %296 = vst [vmem:[#allocation2] sm:$0xf] %v295
      %297 = vst [vmem:[#allocation2 + $0x20] sm:$0xf] %v286
      %298 = vrot.lane.b32.xlu0 %v286, 127
      %v299 = vpop.permute.xlu0 %298
      %v300 = vadd.s32 %v288, 1
      %vm301 = vcmp.ge.s32.totalorder %v300, 0
      %vm302 = vcmp.lt.s32.totalorder %v300, 128
      %vm303 = vmand %vm301, %vm302
      %v304 = vsel %vm303, %v299, 0.0
      %305 = vst [vmem:[#allocation2 + $0x40] sm:$0xf] %v304
      %v306 = vld [vmem:[%s1] sm:$0xff]
      %v307 = vld [vmem:[%s1 + $0x8] sm:$0xff]
      %v308 = vld [vmem:[%s1 + $0x10] sm:$0xff]
      %v309 = vld [vmem:[%s1 + $0x18] sm:$0xff]
      %v310 = vld [vmem:[#allocation2] sm:$0xff]
      %v311 = vld [vmem:[#allocation2 + $0x8] sm:$0xff]
      %v312 = vld [vmem:[#allocation2 + $0x10] sm:$0xff]
      %v313 = vld [vmem:[#allocation2 + $0x18] sm:$0xff]
      %v314 = vld [vmem:[#allocation2 + $0x20] sm:$0xff]
      %v315 = vld [vmem:[#allocation2 + $0x28] sm:$0xff]
      %v316 = vld [vmem:[#allocation2 + $0x30] sm:$0xff]
      %v317 = vld [vmem:[#allocation2 + $0x38] sm:$0xff]
      %v318 = vld [vmem:[#allocation2 + $0x40] sm:$0xff]
      %v319 = vld [vmem:[#allocation2 + $0x48] sm:$0xff]
      %v320 = vld [vmem:[#allocation2 + $0x50] sm:$0xff]
      %v321 = vld [vmem:[#allocation2 + $0x58] sm:$0xff]
      %vm322 = vcmask 785408
      %v324 = vsel %vm322, %v306, 0
      %v327 = vsel %vm322, %v307, 0
      %v330 = vsel %vm322, %v308, 0
      %v333 = vsel %vm322, %v309, 0
      %335 = vmatprep.subr.mxu0 0.0
      %336 = vmatpush1.msra.mxu0 %v310
      %337 = vmatprep.subr.mxu0 0.0
      %338 = vmatpush1.msra.mxu0 %v311
      %339 = vmatprep.subr.mxu0 0.0
      %340 = vmatpush1.msra.mxu0 %v312
      %341 = vmatprep.subr.mxu0 0.0
      %342 = vmatpush1.msra.mxu0 %v313
      %343 = vmatprep.subr.mxu0 0.0
      %344 = vmatpush1.msra.mxu0 %v314
      %345 = vmatprep.subr.mxu0 0.0
      %346 = vmatpush1.msra.mxu0 %v315
      %347 = vmatprep.subr.mxu0 0.0
      %348 = vmatpush1.msra.mxu0 %v316
      %349 = vmatprep.subr.mxu0 0.0
      %350 = vmatpush1.msra.mxu0 %v317
      %351 = vmatprep.subr.mxu0 0.0
      %352 = vmatpush1.msra.mxu0 %v318
      %353 = vmatprep.subr.mxu0 0.0
      %354 = vmatpush1.msra.mxu0 %v319
      %355 = vmatprep.subr.mxu0 0.0
      %356 = vmatpush1.msra.mxu0 %v320
      %357 = vmatprep.subr.mxu0 0.0
      %358 = vmatpush1.msra.mxu0 %v321
      %359 = vmatprep.subr.mxu0 0.0
      %360 = vmatpush1.msra.mxu0 0.0
      %361 = vmatprep.subr.mxu0 0.0
      %362 = vmatpush1.msra.mxu0 0.0
      %363 = vmatprep.subr.mxu0 0.0
      %364 = vmatpush1.msra.mxu0 0.0
      %365 = vmatprep.subr.mxu0 0.0
      %366 = vmatpush1.msra.mxu0 0.0
      %367 = vmatprep.subr.mxu0 0.0
      %368 = vmatpush1.msra.mxu0 0.0
      %369 = vmatprep.subr.mxu0 0.0
      %370 = vmatpush1.msra.mxu0 0.0
      %371 = vmatprep.subr.mxu0 0.0
      %372 = vmatpush1.msra.mxu0 0.0
      %373 = vmatprep.subr.mxu0 0.0
      %374 = vmatpush1.msra.mxu0 0.0
      %375 = vmatprep.subr.mxu0 0.0
      %376 = vmatpush1.msra.mxu0 0.0
      %377 = vmatprep.subr.mxu0 0.0
      %378 = vmatpush1.msra.mxu0 0.0
      %379 = vmatprep.subr.mxu0 0.0
      %380 = vmatpush1.msra.mxu0 0.0
      %381 = vmatprep.subr.mxu0 0.0
      %382 = vmatpush1.msra.mxu0 0.0
      %383 = vmatprep.subr.mxu0 0.0
      %384 = vmatpush1.msra.mxu0 0.0
      %385 = vmatprep.subr.mxu0 0.0
      %386 = vmatpush1.msra.mxu0 0.0
      %387 = vmatprep.subr.mxu0 0.0
      %388 = vmatpush1.msra.mxu0 0.0
      %389 = vmatprep.subr.mxu0 0.0
      %390 = vmatpush1.msra.mxu0 0.0
      %391 = vmatprep.subr.mxu0 0.0
      %392 = vmatpush1.msra.mxu0 0.0
      %393 = vmatprep.subr.mxu0 0.0
      %394 = vmatpush1.msra.mxu0 0.0
      %395 = vmatprep.subr.mxu0 0.0
      %396 = vmatpush1.msra.mxu0 0.0
      %397 = vmatprep.subr.mxu0 0.0
      %398 = vmatpush1.msra.mxu0 0.0
      %399 = vmatprep.mubr.f32.mxu0 0.0
      %400 = vmatmul.mubr.f32.gmra.mrb[0].mxu0 %v324
      %v401 = vpop.f32.mrb[0].mxu0
      %v402 = vadd.f32 0.0, %v401
      %v403 = vpop.f32.mrb[0].mxu0
      %404 = vmatprep.mubr.f32.mxu0 0.0
      %405 = vmatmul.mubr.f32.gmra.mrb[0].mxu0 %v327
      %v406 = vpop.f32.mrb[0].mxu0
      %v407 = vadd.f32 0.0, %v406
      %v408 = vpop.f32.mrb[0].mxu0
      %409 = vmatprep.mubr.f32.mxu0 0.0
      %410 = vmatmul.mubr.f32.gmra.mrb[0].mxu0 %v330
      %v411 = vpop.f32.mrb[0].mxu0
      %v412 = vadd.f32 0.0, %v411
      %v413 = vpop.f32.mrb[0].mxu0
      %414 = vmatprep.mubr.f32.mxu0 0.0
      %415 = vmatmul.mubr.f32.gmra.mrb[0].mxu0 %v333
      %v416 = vpop.f32.mrb[0].mxu0
      %v417 = vadd.f32 0.0, %v416
      %v418 = vpop.f32.mrb[0].mxu0
      %419 = vdwg.mxu0
      %v420 = vld [vmem:[%s2] sm:$0xff]
      %v421 = vld [vmem:[%s2 + $0x8] sm:$0xff]
      %v422 = vld [vmem:[%s2 + $0x10] sm:$0xff]
      %v423 = vld [vmem:[%s2 + $0x18] sm:$0xff]
      %425 = vset.pattern.permute.xlu0 0
      %426 = vperm.xlu0 %425, %v420
      %v427 = vpop.permute.xlu0 %426
      %430 = vset.pattern.permute.xlu0 0
      %431 = vperm.xlu0 %430, %v421
      %v432 = vpop.permute.xlu0 %431
      %435 = vset.pattern.permute.xlu0 0
      %436 = vperm.xlu0 %435, %v422
      %v437 = vpop.permute.xlu0 %436
      %440 = vset.pattern.permute.xlu0 0
      %441 = vperm.xlu0 %440, %v423
      %v442 = vpop.permute.xlu0 %441
      %v444 = vmul.f32 %v402, %v427
      %v445 = vmul.f32 %v407, %v432
      %v446 = vmul.f32 %v412, %v437
      %v447 = vmul.f32 %v417, %v442
      %s448 = scalar_lea.vmem %s2, 32
      %v449 = vld [vmem:[%s448] sm:$0xff]
      %v450 = vld [vmem:[%s448 + $0x8] sm:$0xff]
      %v451 = vld [vmem:[%s448 + $0x10] sm:$0xff]
      %v452 = vld [vmem:[%s448 + $0x18] sm:$0xff]
      %454 = vset.pattern.permute.xlu0 0
      %455 = vperm.xlu0 %454, %v449
      %v456 = vpop.permute.xlu0 %455
      %459 = vset.pattern.permute.xlu0 0
      %460 = vperm.xlu0 %459, %v450
      %v461 = vpop.permute.xlu0 %460
      %464 = vset.pattern.permute.xlu0 0
      %465 = vperm.xlu0 %464, %v451
      %v466 = vpop.permute.xlu0 %465
      %469 = vset.pattern.permute.xlu0 0
      %470 = vperm.xlu0 %469, %v452
      %v471 = vpop.permute.xlu0 %470
      %v473 = vadd.f32 %v444, %v456
      %v474 = vadd.f32 %v445, %v461
      %v475 = vadd.f32 %v446, %v466
      %v476 = vadd.f32 %v447, %v471
      %v477 = vmax.f32 %v473, 0.0
      %v478 = vmax.f32 %v474, 0.0
      %v479 = vmax.f32 %v475, 0.0
      %v480 = vmax.f32 %v476, 0.0
      %481 = vrot.lane.b32.xlu0 %v477, 2
      %v482 = vpop.permute.xlu0 %481
      %483 = vrot.lane.b32.xlu0 %v478, 2
      %v484 = vpop.permute.xlu0 %483
      %485 = vrot.lane.b32.xlu0 %v479, 2
      %v486 = vpop.permute.xlu0 %485
      %487 = vrot.lane.b32.xlu0 %v480, 2
      %v488 = vpop.permute.xlu0 %487
      %v489 = vadd.s32 %v288, 4294967294
      %vm490 = vcmp.ge.s32.totalorder %v489, 0
      %vm491 = vcmp.lt.s32.totalorder %v489, 128
      %vm492 = vmand %vm490, %vm491
      %v493 = vsel %vm492, %v482, 0.0
      %v494 = vsel %vm492, %v484, 0.0
      %v495 = vsel %vm492, %v486, 0.0
      %v496 = vsel %vm492, %v488, 0.0
      %497 = vst [vmem:[#allocation2] sm:$0xff] %v493
      %498 = vst [vmem:[#allocation2 + $0x8] sm:$0xff] %v494
      %499 = vst [vmem:[#allocation2 + $0x10] sm:$0xff] %v495
      %500 = vst [vmem:[#allocation2 + $0x18] sm:$0xff] %v496
      %501 = vst [vmem:[#allocation2 + $0x20] sm:$0xff] %v477
      %502 = vst [vmem:[#allocation2 + $0x28] sm:$0xff] %v478
      %503 = vst [vmem:[#allocation2 + $0x30] sm:$0xff] %v479
      %504 = vst [vmem:[#allocation2 + $0x38] sm:$0xff] %v480
      %505 = vrot.lane.b32.xlu0 %v477, 126
      %v506 = vpop.permute.xlu0 %505
      %507 = vrot.lane.b32.xlu0 %v478, 126
      %v508 = vpop.permute.xlu0 %507
      %509 = vrot.lane.b32.xlu0 %v479, 126
      %v510 = vpop.permute.xlu0 %509
      %511 = vrot.lane.b32.xlu0 %v480, 126
      %v512 = vpop.permute.xlu0 %511
      %v513 = vadd.s32 %v288, 2
      %vm514 = vcmp.ge.s32.totalorder %v513, 0
      %vm515 = vcmp.lt.s32.totalorder %v513, 128
      %vm516 = vmand %vm514, %vm515
      %v517 = vsel %vm516, %v506, 0.0
      %v518 = vsel %vm516, %v508, 0.0
      %v519 = vsel %vm516, %v510, 0.0
      %v520 = vsel %vm516, %v512, 0.0
      %521 = vst [vmem:[#allocation2 + $0x40] sm:$0xff] %v517
      %522 = vst [vmem:[#allocation2 + $0x48] sm:$0xff] %v518
      %523 = vst [vmem:[#allocation2 + $0x50] sm:$0xff] %v519
      %524 = vst [vmem:[#allocation2 + $0x58] sm:$0xff] %v520
      %v525 = vld [vmem:[%s3] sm:$0xff]
      %v526 = vld [vmem:[%s3 + $0x8] sm:$0xff]
      %v527 = vld [vmem:[%s3 + $0x10] sm:$0xff]
      %v528 = vld [vmem:[%s3 + $0x18] sm:$0xff]
      %v529 = vld [vmem:[#allocation2] sm:$0xff]
      %v530 = vld [vmem:[#allocation2 + $0x8] sm:$0xff]
      %v531 = vld [vmem:[#allocation2 + $0x10] sm:$0xff]
      %v532 = vld [vmem:[#allocation2 + $0x18] sm:$0xff]
      %v533 = vld [vmem:[#allocation2 + $0x20] sm:$0xff]
      %v534 = vld [vmem:[#allocation2 + $0x28] sm:$0xff]
      %v535 = vld [vmem:[#allocation2 + $0x30] sm:$0xff]
      %v536 = vld [vmem:[#allocation2 + $0x38] sm:$0xff]
      %v537 = vld [vmem:[#allocation2 + $0x40] sm:$0xff]
      %v538 = vld [vmem:[#allocation2 + $0x48] sm:$0xff]
      %v539 = vld [vmem:[#allocation2 + $0x50] sm:$0xff]
      %v540 = vld [vmem:[#allocation2 + $0x58] sm:$0xff]
      %v542 = vsel %vm322, %v525, 0
      %v545 = vsel %vm322, %v526, 0
      %v548 = vsel %vm322, %v527, 0
      %v551 = vsel %vm322, %v528, 0
      %553 = vmatprep.subr.mxu0 0.0
      %554 = vmatpush1.msra.mxu0 %v529
      %555 = vmatprep.subr.mxu0 0.0
      %556 = vmatpush1.msra.mxu0 %v530
      %557 = vmatprep.subr.mxu0 0.0
      %558 = vmatpush1.msra.mxu0 %v531
      %559 = vmatprep.subr.mxu0 0.0
      %560 = vmatpush1.msra.mxu0 %v532
      %561 = vmatprep.subr.mxu0 0.0
      %562 = vmatpush1.msra.mxu0 %v533
      %563 = vmatprep.subr.mxu0 0.0
      %564 = vmatpush1.msra.mxu0 %v534
      %565 = vmatprep.subr.mxu0 0.0
      %566 = vmatpush1.msra.mxu0 %v535
      %567 = vmatprep.subr.mxu0 0.0
      %568 = vmatpush1.msra.mxu0 %v536
      %569 = vmatprep.subr.mxu0 0.0
      %570 = vmatpush1.msra.mxu0 %v537
      %571 = vmatprep.subr.mxu0 0.0
      %572 = vmatpush1.msra.mxu0 %v538
      %573 = vmatprep.subr.mxu0 0.0
      %574 = vmatpush1.msra.mxu0 %v539
      %575 = vmatprep.subr.mxu0 0.0
      %576 = vmatpush1.msra.mxu0 %v540
      %577 = vmatprep.subr.mxu0 0.0
      %578 = vmatpush1.msra.mxu0 0.0
      %579 = vmatprep.subr.mxu0 0.0
      %580 = vmatpush1.msra.mxu0 0.0
      %581 = vmatprep.subr.mxu0 0.0
      %582 = vmatpush1.msra.mxu0 0.0
      %583 = vmatprep.subr.mxu0 0.0
      %584 = vmatpush1.msra.mxu0 0.0
      %585 = vmatprep.subr.mxu0 0.0
      %586 = vmatpush1.msra.mxu0 0.0
      %587 = vmatprep.subr.mxu0 0.0
      %588 = vmatpush1.msra.mxu0 0.0
      %589 = vmatprep.subr.mxu0 0.0
      %590 = vmatpush1.msra.mxu0 0.0
      %591 = vmatprep.subr.mxu0 0.0
      %592 = vmatpush1.msra.mxu0 0.0
      %593 = vmatprep.subr.mxu0 0.0
      %594 = vmatpush1.msra.mxu0 0.0
      %595 = vmatprep.subr.mxu0 0.0
      %596 = vmatpush1.msra.mxu0 0.0
      %597 = vmatprep.subr.mxu0 0.0
      %598 = vmatpush1.msra.mxu0 0.0
      %599 = vmatprep.subr.mxu0 0.0
      %600 = vmatpush1.msra.mxu0 0.0
      %601 = vmatprep.subr.mxu0 0.0
      %602 = vmatpush1.msra.mxu0 0.0
      %603 = vmatprep.subr.mxu0 0.0
      %604 = vmatpush1.msra.mxu0 0.0
      %605 = vmatprep.subr.mxu0 0.0
      %606 = vmatpush1.msra.mxu0 0.0
      %607 = vmatprep.subr.mxu0 0.0
      %608 = vmatpush1.msra.mxu0 0.0
      %609 = vmatprep.subr.mxu0 0.0
      %610 = vmatpush1.msra.mxu0 0.0
      %611 = vmatprep.subr.mxu0 0.0
      %612 = vmatpush1.msra.mxu0 0.0
      %613 = vmatprep.subr.mxu0 0.0
      %614 = vmatpush1.msra.mxu0 0.0
      %615 = vmatprep.subr.mxu0 0.0
      %616 = vmatpush1.msra.mxu0 0.0
      %617 = vmatprep.mubr.f32.mxu0 0.0
      %618 = vmatmul.mubr.f32.gmra.mrb[0].mxu0 %v542
      %v619 = vpop.f32.mrb[0].mxu0
      %v620 = vadd.f32 0.0, %v619
      %v621 = vpop.f32.mrb[0].mxu0
      %622 = vmatprep.mubr.f32.mxu0 0.0
      %623 = vmatmul.mubr.f32.gmra.mrb[0].mxu0 %v545
      %v624 = vpop.f32.mrb[0].mxu0
      %v625 = vadd.f32 0.0, %v624
      %v626 = vpop.f32.mrb[0].mxu0
      %627 = vmatprep.mubr.f32.mxu0 0.0
      %628 = vmatmul.mubr.f32.gmra.mrb[0].mxu0 %v548
      %v629 = vpop.f32.mrb[0].mxu0
      %v630 = vadd.f32 0.0, %v629
      %v631 = vpop.f32.mrb[0].mxu0
      %632 = vmatprep.mubr.f32.mxu0 0.0
      %633 = vmatmul.mubr.f32.gmra.mrb[0].mxu0 %v551
      %v634 = vpop.f32.mrb[0].mxu0
      %v635 = vadd.f32 0.0, %v634
      %v636 = vpop.f32.mrb[0].mxu0
      %637 = vdwg.mxu0
      %v638 = vld [vmem:[%s4] sm:$0xff]
      %v639 = vld [vmem:[%s4 + $0x8] sm:$0xff]
      %v640 = vld [vmem:[%s4 + $0x10] sm:$0xff]
      %v641 = vld [vmem:[%s4 + $0x18] sm:$0xff]
      %643 = vset.pattern.permute.xlu0 0
      %644 = vperm.xlu0 %643, %v638
      %v645 = vpop.permute.xlu0 %644
      %648 = vset.pattern.permute.xlu0 0
      %649 = vperm.xlu0 %648, %v639
      %v650 = vpop.permute.xlu0 %649
      %653 = vset.pattern.permute.xlu0 0
      %654 = vperm.xlu0 %653, %v640
      %v655 = vpop.permute.xlu0 %654
      %658 = vset.pattern.permute.xlu0 0
      %659 = vperm.xlu0 %658, %v641
      %v660 = vpop.permute.xlu0 %659
      %v662 = vmul.f32 %v620, %v645
      %v663 = vmul.f32 %v625, %v650
      %v664 = vmul.f32 %v630, %v655
      %v665 = vmul.f32 %v635, %v660
      %s666 = scalar_lea.vmem %s4, 32
      %v667 = vld [vmem:[%s666] sm:$0xff]
      %v668 = vld [vmem:[%s666 + $0x8] sm:$0xff]
      %v669 = vld [vmem:[%s666 + $0x10] sm:$0xff]
      %v670 = vld [vmem:[%s666 + $0x18] sm:$0xff]
      %672 = vset.pattern.permute.xlu0 0
      %673 = vperm.xlu0 %672, %v667
      %v674 = vpop.permute.xlu0 %673
      %677 = vset.pattern.permute.xlu0 0
      %678 = vperm.xlu0 %677, %v668
      %v679 = vpop.permute.xlu0 %678
      %682 = vset.pattern.permute.xlu0 0
      %683 = vperm.xlu0 %682, %v669
      %v684 = vpop.permute.xlu0 %683
      %687 = vset.pattern.permute.xlu0 0
      %688 = vperm.xlu0 %687, %v670
      %v689 = vpop.permute.xlu0 %688
      %v691 = vadd.f32 %v662, %v674
      %v692 = vadd.f32 %v663, %v679
      %v693 = vadd.f32 %v664, %v684
      %v694 = vadd.f32 %v665, %v689
      %v695 = vmax.f32 %v691, 0.0
      %v696 = vmax.f32 %v692, 0.0
      %v697 = vmax.f32 %v693, 0.0
      %v698 = vmax.f32 %v694, 0.0
      %699 = vadd.xlane.f32.xlu0 %v695
      %v700 = vpop.xlane.xlu0 %699
      %701 = vadd.xlane.f32.xlu0 %v696
      %v702 = vpop.xlane.xlu0 %701
      %703 = vadd.xlane.f32.xlu0 %v697
      %v704 = vpop.xlane.xlu0 %703
      %705 = vadd.xlane.f32.xlu0 %v698
      %v706 = vpop.xlane.xlu0 %705
      %v707 = vld [vmem:[%s5] sm:$0x7]
      %v708 = vld [vmem:[%s6] sm:$0x7]
      %vm709 = vcmask 261120
      %v711 = vsel %vm709, %v707, 0
      %713 = vmatprep.subr.mxu0 0.0
      %714 = vmatpush1.msra.mxu0 %v700
      %715 = vmatprep.subr.mxu0 0.0
      %716 = vmatpush1.msra.mxu0 %v702
      %717 = vmatprep.subr.mxu0 0.0
      %718 = vmatpush1.msra.mxu0 %v704
      %719 = vmatprep.subr.mxu0 0.0
      %720 = vmatpush1.msra.mxu0 %v706
      %721 = vmatprep.subr.mxu0 0.0
      %722 = vmatpush1.msra.mxu0 0.0
      %723 = vmatprep.subr.mxu0 0.0
      %724 = vmatpush1.msra.mxu0 0.0
      %725 = vmatprep.subr.mxu0 0.0
      %726 = vmatpush1.msra.mxu0 0.0
      %727 = vmatprep.subr.mxu0 0.0
      %728 = vmatpush1.msra.mxu0 0.0
      %729 = vmatprep.subr.mxu0 0.0
      %730 = vmatpush1.msra.mxu0 0.0
      %731 = vmatprep.subr.mxu0 0.0
      %732 = vmatpush1.msra.mxu0 0.0
      %733 = vmatprep.subr.mxu0 0.0
      %734 = vmatpush1.msra.mxu0 0.0
      %735 = vmatprep.subr.mxu0 0.0
      %736 = vmatpush1.msra.mxu0 0.0
      %737 = vmatprep.subr.mxu0 0.0
      %738 = vmatpush1.msra.mxu0 0.0
      %739 = vmatprep.subr.mxu0 0.0
      %740 = vmatpush1.msra.mxu0 0.0
      %741 = vmatprep.subr.mxu0 0.0
      %742 = vmatpush1.msra.mxu0 0.0
      %743 = vmatprep.subr.mxu0 0.0
      %744 = vmatpush1.msra.mxu0 0.0
      %745 = vmatprep.subr.mxu0 0.0
      %746 = vmatpush1.msra.mxu0 0.0
      %747 = vmatprep.subr.mxu0 0.0
      %748 = vmatpush1.msra.mxu0 0.0
      %749 = vmatprep.subr.mxu0 0.0
      %750 = vmatpush1.msra.mxu0 0.0
      %751 = vmatprep.subr.mxu0 0.0
      %752 = vmatpush1.msra.mxu0 0.0
      %753 = vmatprep.subr.mxu0 0.0
      %754 = vmatpush1.msra.mxu0 0.0
      %755 = vmatprep.subr.mxu0 0.0
      %756 = vmatpush1.msra.mxu0 0.0
      %757 = vmatprep.subr.mxu0 0.0
      %758 = vmatpush1.msra.mxu0 0.0
      %759 = vmatprep.subr.mxu0 0.0
      %760 = vmatpush1.msra.mxu0 0.0
      %761 = vmatprep.subr.mxu0 0.0
      %762 = vmatpush1.msra.mxu0 0.0
      %763 = vmatprep.subr.mxu0 0.0
      %764 = vmatpush1.msra.mxu0 0.0
      %765 = vmatprep.subr.mxu0 0.0
      %766 = vmatpush1.msra.mxu0 0.0
      %767 = vmatprep.subr.mxu0 0.0
      %768 = vmatpush1.msra.mxu0 0.0
      %769 = vmatprep.subr.mxu0 0.0
      %770 = vmatpush1.msra.mxu0 0.0
      %771 = vmatprep.subr.mxu0 0.0
      %772 = vmatpush1.msra.mxu0 0.0
      %773 = vmatprep.subr.mxu0 0.0
      %774 = vmatpush1.msra.mxu0 0.0
      %775 = vmatprep.subr.mxu0 0.0
      %776 = vmatpush1.msra.mxu0 0.0
      %777 = vmatprep.mubr.f32.mxu0 0.0
      %778 = vmatmul.mubr.f32.gmra.mrb[0].mxu0 %v711
      %v779 = vpop.f32.mrb[0].mxu0
      %v780 = vadd.f32 %v708, %v779
      %v781 = vpop.f32.mrb[0].mxu0
      %782 = vdwg.mxu0
      %v783 = vxor.u32 %v780, 2147483648
      %v784 = vmul.f32 %v783, 1.442695
      %v785 = vpow.pop %v784
      %v786 = vadd.f32 %v785, 1.0
      %v787 = vrcp.pop %v786
      %v788 = vmul.f32 1.0, %v787
      %vm789 = vcmask 2048
      %790 = vst.msk [vmem:[%s273] sm:$0x7] %vm789, %v788
      %p791 = scmp.lt.s32.totalorder %s18, 1
      %s792 = scalar_select %p791, %s18, 1
      %s793 = smul.addr %s792, 4
      %s794 = scalar_lea.vmem %s7, %s793
      // Predicated region
      $region49: #{tpu_custom_call.1} parent=47 // pred_check
        %p795 = pneg %p188
      $region50: #{tpu_custom_call.1} parent=47 // pred_check_branch
        %797 = sbr.rel (%p795) target = $region52
      $region51: #{tpu_custom_call.1} parent=47 // pred_region
        _
      $region52: #{tpu_custom_call.1} parent=47 // pred_fallthru
        _
    $region48: #{tpu_custom_call.1} parent=5 // pred_fallthru
      _
    %p798 = scmp.le.s32.totalorder 2, %s13
    // Predicated region
    $region53: #{tpu_custom_call.1} parent=5 // pred_check
      %p799 = pneg %p798
    $region54: #{tpu_custom_call.1} parent=5 // pred_check_branch
      %801 = sbr.rel (%p799) target = $region56
    $region55: #{tpu_custom_call.1} parent=5 // pred_region
      %s802 = ssub.s32 %s13, 2
      // Predicated region
      $region57: #{tpu_custom_call.1} parent=55 // pred_check
        %p803 = pneg %p194
      $region58: #{tpu_custom_call.1} parent=55 // pred_check_branch
        %805 = sbr.rel (%p803) target = $region60
      $region59: #{tpu_custom_call.1} parent=55 // pred_region
        %p806 = scmp.lt.s32.totalorder %s19, 1
        %s807 = scalar_select %p806, %s19, 1
        %s808 = smul.addr %s807, 4
        %s809 = scalar_lea.vmem %s7, %s808
      $region60: #{tpu_custom_call.1} parent=55 // pred_fallthru
        _
    $region56: #{tpu_custom_call.1} parent=5 // pred_fallthru
      _
  $region6: #{tpu_custom_call.1} parent=0 // loop_footer
    %s17 = sadd.s32 1, %s13
  $region7: #{tpu_custom_call.1} parent=0 // loop_footer_branch
    %12 = sbr.rel target = $region3
  $region8: #{tpu_custom_call.1} parent=0 // loop_exit
    _

</llo_original>
